<compile_context>
chip_gen: v7x
topology: tpu7x:2x2x1
jax: 0.10.0
libtpu: 0.0.40
codegen_flags: <defaults>
</compile_context>

<pallas_src>
import jax
import jax.numpy as jnp
from jax.experimental import pallas as pl
from jax.experimental.pallas import tpu as pltpu


def _linreg_kernel(wb_ref, x_ref, o_ref):
    # wb_ref: SMEM (2,) float32 scalar-prefetch ref -> [weight, bias].
    w = wb_ref[0]
    b = wb_ref[1]
    x = x_ref[...].astype(jnp.float32)          # in-kernel upcast only (no-op for f32)
    o_ref[...] = (w * x + b).astype(o_ref.dtype)


def _choose_layout(n):
    """Pick a lane-dense (lanes, rows, pad) slab for n flattened elements."""
    candidates = (8192, 4096, 2048, 1024, 512, 256, 128)
    # Prefer the widest lane width that still leaves >= 8 sublane rows.
    for lanes in candidates:
        if n % lanes == 0 and n // lanes >= 8:
            return lanes, n // lanes, 0
    # Tiny inputs: widest exact divisor.
    for lanes in candidates:
        if n % lanes == 0:
            return lanes, n // lanes, 0
    # Ragged fallback (rare): pad up to a multiple of 128.
    # TODO(synk): handle the ragged tail with an in-kernel masked store instead of a pad copy.
    lanes = 128
    pad = (-n) % lanes
    return lanes, (n + pad) // lanes, pad


def linear_regression_forward(x, weights, bias):
    """weights * x + bias with scalar (shape-(1,)) weights/bias."""
    orig_shape = x.shape
    out_dtype = x.dtype                         # native-dtype I/O (no f32 blowup)
    n = x.size

    lanes, rows, pad = _choose_layout(n)

    x_flat = x.reshape(-1)
    if pad:
        x_flat = jnp.pad(x_flat, (0, pad))      # only hit for non-128-multiple sizes
    x2d = x_flat.reshape(rows, lanes)           # free reshape, no dtype cast

    # ~2 MiB blocks: big enough to hit >=85% of HBM roofline, small enough that
    # double-buffered in+out (~8 MiB) fits v5e's 16 MiB scoped-VMEM default and
    # v7x's 32 MiB default without raising vmem_limit_bytes.
    itemsize = jnp.dtype(out_dtype).itemsize
    target_block_bytes = 2 << 20
    br = max(8, (target_block_bytes // (lanes * itemsize)) // 8 * 8)
    block_rows = rows if br >= rows else br     # full-dim block allowed for small inputs

    # [weight, bias] on the scalar path (SMEM, prefetched before the grid runs).
    wb = jnp.concatenate([weights.reshape(-1), bias.reshape(-1)]).astype(jnp.float32)

    grid = (pl.cdiv(rows, block_rows),)
    out2d = pl.pallas_call(
        _linreg_kernel,
        out_shape=jax.ShapeDtypeStruct((rows, lanes), out_dtype),
        grid_spec=pltpu.PrefetchScalarGridSpec(
            num_scalar_prefetch=1,              # wb -> SMEM before the grid starts
            grid=grid,
            in_specs=[
                pl.BlockSpec((block_rows, lanes), lambda i, wb_ref: (i, 0)),   # x tile
            ],
            out_specs=pl.BlockSpec((block_rows, lanes), lambda i, wb_ref: (i, 0)),
        ),
        compiler_params=pltpu.CompilerParams(
            dimension_semantics=("parallel",),  # lets v7x shard the grid across its 2 TCs
        ),
    )(wb, x2d)

    if pad:
        y = out2d.reshape(-1)[:n].reshape(orig_shape)
    else:
        y = out2d.reshape(orig_shape)
    return y


if __name__ == "__main__":
    key = jax.random.PRNGKey(0)
    kx, kw, kb = jax.random.split(key, 3)

    # Parameters match torch.randn(1) shapes/dtype.
    weights = jax.random.normal(kw, (1,), dtype=jnp.float32)
    bias = jax.random.normal(kb, (1,), dtype=jnp.float32)

    # Small representative input; forward works for any shape.
    x = jax.random.normal(kx, (2, 4, 16, 16), dtype=jnp.float32)

    y = linear_regression_forward(x, weights, bias)
    y = jax.block_until_ready(y)

    # Correctness check against plain JAX reference.
    y_ref = weights * x + bias
    assert y.shape == x.shape
    assert y.dtype == x.dtype
    assert jnp.allclose(y, y_ref, atol=1e-6, rtol=1e-6)

    print("KERNEL_OK")
</pallas_src>

<mosaic_0001>
module attributes {stable_mosaic.version = 11 : i64} {
  func.func @_linreg_kernel(%arg0: i32, %arg1: memref<2xf32, #tpu.memory_space<smem>>, %arg2: memref<8x256xf32, #tpu.memory_space<vmem>>, %arg3: memref<8x256xf32, #tpu.memory_space<vmem>>) attributes {dimension_semantics = [#tpu.dimension_semantics<parallel>], iteration_bounds = array<i64: 1>, scalar_prefetch = 1 : i64, scratch_operands = 0 : i64, tpu.core_type = #tpu.core_type<tc>, window_params = [{transform_indices = @transform_0, window_bounds = array<i64: 8, 256>}, {transform_indices = @transform_1, window_bounds = array<i64: 8, 256>}]} {
    %c0 = arith.constant 0 : index
    %0 = memref.load %arg1[%c0] : memref<2xf32, #tpu.memory_space<smem>>
    %c1 = arith.constant 1 : index
    %1 = memref.load %arg1[%c1] : memref<2xf32, #tpu.memory_space<smem>>
    %c0_0 = arith.constant 0 : index
    %c0_1 = arith.constant 0 : index
    %2 = vector.load %arg2[%c0_0, %c0_1] : memref<8x256xf32, #tpu.memory_space<vmem>>, vector<8x256xf32>
    %3 = vector.broadcast %0 : f32 to vector<8x256xf32>
    %4 = arith.mulf %3, %2 : vector<8x256xf32>
    %5 = vector.broadcast %1 : f32 to vector<8x256xf32>
    %6 = arith.addf %4, %5 : vector<8x256xf32>
    %c0_2 = arith.constant 0 : index
    %c0_3 = arith.constant 0 : index
    %7 = vector.load %arg3[%c0_2, %c0_3] : memref<8x256xf32, #tpu.memory_space<vmem>>, vector<8x256xf32>
    tpu.vector_store %arg3[%c0_2, %c0_3], %6 {strides = array<i32>} : memref<8x256xf32, #tpu.memory_space<vmem>>, vector<8x256xf32>,
    return
  }
  func.func @transform_0(%arg0: i32, %arg1: memref<2xf32, #tpu.memory_space<smem>>) -> (i32, i32) {
    %c0_i32 = arith.constant 0 : i32
    %c0_i32_0 = arith.constant 0 : i32
    return %arg0, %c0_i32 : i32, i32
  }
  func.func @transform_1(%arg0: i32, %arg1: memref<2xf32, #tpu.memory_space<smem>>) -> (i32, i32) {
    %c0_i32 = arith.constant 0 : i32
    %c0_i32_0 = arith.constant 0 : i32
    return %arg0, %c0_i32 : i32, i32
  }
}

</mosaic_0001>

<llo_original>
// kernel: tpu_custom_call.1
$region0: #{tpu_custom_call.1}
  #allocation0 [shape = 'u32[]', space=smem, size = 0x4, offset = 0x4, fixed_abs, tag = 'smem constant byte address 0x4 - core index']
  #allocation1 [shape = 'u32[144,128]{1,0:T(1,128)}', space=vmem, size = 0x12000, scoped, tag = 'internal scratch']
  #allocation2 [shape = 's32[1]{0}', space=sflag, size = 0x4, scoped, tag = 'scoped memory for tpu_custom_call.1']
  #allocation3 [shape = 'u8[512]{0}', space=smem, size = 0x200, scoped, tag = 'prefetched SMEM operand 0']
  %s0 = inlined_call_operand.hbm [shape: f32[2], index: 0, kind: input, shape index: {}]
  %s1 = inlined_call_operand.hbm [shape: f32[8,256], index: 1, kind: input, shape index: {}]
  %s2 = inlined_call_operand.hbm [shape: f32[8,256], index: 2, kind: output, shape index: {}]
  %s3 = sld [smem:[#allocation0]]
  $region18: #{tpu_custom_call.1} parent=0
    _
  %s5 = ssub.s32 1, %s3
  %s6 = scalar_select 0, %s5, %s3
  %8 = dma.hbm_to_smem %s0, 16, [#allocation3], [#allocation2]
  %9 = dma.done [#allocation2], 16
  %10 = sfence
  $region1: #{tpu_custom_call.1} parent=0
    #allocation4 [shape = 'u8[8192]{0}', space=vmem, size = 0x2000, scoped, tag = 'input window, operand 1, single buffered']
    #allocation5 [shape = 's32[1]{0}', space=sflag, size = 0x4, scoped, tag = 'scoped memory for tpu_custom_call.1']
    #allocation6 [shape = 's32[1]{0}', space=sflag, size = 0x4, scoped, tag = 'scoped memory for tpu_custom_call.1']
    #allocation7 [shape = 'u8[8192]{0}', space=vmem, size = 0x2000, scoped, tag = 'output window, operand 0, single buffered']
    %11 = vsyncpa [#allocation5], 0
    %12 = vsyncpa [#allocation6], 0
    // Predicated region
    $region2: #{tpu_custom_call.1} parent=1 // pred_check
      _
    $region3: #{tpu_custom_call.1} parent=1 // pred_check_branch
      %14 = sbr.rel (0) target = $region5
    $region4: #{tpu_custom_call.1} parent=1 // pred_region
      %s16 = ssub.s32 256, 256
      %17 = vsyncadd [#allocation5], %s16
      %s19 = sshll.u32 [#allocation4], 4
      %s20 = int_to_ptr.vmem [resolvable:$true] %s19
      %22 = dma.hbm_to_vmem [thread:$0]  %s1, 256, %s20, [#allocation5]
    $region5: #{tpu_custom_call.1} parent=1 // pred_fallthru
      _
    // Predicated region
    $region6: #{tpu_custom_call.1} parent=1 // pred_check
      _
    $region7: #{tpu_custom_call.1} parent=1 // pred_check_branch
      %24 = sbr.rel (0) target = $region9
    $region8: #{tpu_custom_call.1} parent=1 // pred_region
      %25 = dma.done [#allocation5], 256
    $region9: #{tpu_custom_call.1} parent=1 // pred_fallthru
      _
    %s26 = sld [smem:[#allocation3]]
    %s27 = sld [smem:[#allocation3 + $0x1]]
    %v28 = vld [vmem:[#allocation4] sm:$0xff]
    %v29 = vld [vmem:[#allocation4 + $0x8] sm:$0xff]
    %v30 = vstv %s26
    %v31 = vmul.f32 %v30, %v28
    %v32 = vmul.f32 %v30, %v29
    %v33 = vstv %s27
    %v34 = vadd.f32 %v31, %v33
    %v35 = vadd.f32 %v32, %v33
    %36 = vst [vmem:[#allocation7] sm:$0xff] %v34
    %37 = vst [vmem:[#allocation7 + $0x8] sm:$0xff] %v35
    // Predicated region
    $region10: #{tpu_custom_call.1} parent=1 // pred_check
      _
    $region11: #{tpu_custom_call.1} parent=1 // pred_check_branch
      %39 = sbr.rel (0) target = $region13
    $region12: #{tpu_custom_call.1} parent=1 // pred_region
      %s41 = ssub.s32 256, 256
      %42 = vsyncadd [#allocation6], %s41
      %s44 = sshll.u32 [#allocation7], 4
      %s45 = int_to_ptr.vmem [resolvable:$true] %s44
      %47 = dma.vmem_to_hbm [thread:$0]  %s45, 256, %s2, [#allocation6]
    $region13: #{tpu_custom_call.1} parent=1 // pred_fallthru
      _
    // Predicated region
    $region14: #{tpu_custom_call.1} parent=1 // pred_check
      _
    $region15: #{tpu_custom_call.1} parent=1 // pred_check_branch
      %49 = sbr.rel (0) target = $region17
    $region16: #{tpu_custom_call.1} parent=1 // pred_region
      %50 = dma.done [#allocation6], 256
    $region17: #{tpu_custom_call.1} parent=1 // pred_fallthru
      _
    %51 = vsyncpa [#allocation5], 1
    %52 = vsyncpa [#allocation6], 1

</llo_original>
